<compile_context>
chip_gen: v7x
topology: tpu7x:2x2x1
jax: 0.10.0
libtpu: 0.0.40
codegen_flags: <defaults>
</compile_context>

<pallas_src>
import math

import jax
import jax.numpy as jnp
from jax import lax
from jax.experimental import pallas as pl
from jax.experimental.pallas import tpu as pltpu

_INV_SQRT2 = 0.7071067811865476


def _gelu_exact(h):
    # exact erf-based GELU (nn.GELU() default); lowers to a VPU polynomial.
    return 0.5 * h * (1.0 + lax.erf(h * _INV_SQRT2))


# ---------------------------------------------------------------------------
# Kernels
# ---------------------------------------------------------------------------

def _mlp_kernel_resident(x_ref, w1_ref, b1_ref, w2_ref, b2_ref, o_ref):
    """1-D grid over row tiles; W1/W2 fully VMEM-resident (constant index).

    No scratch accumulator: the fc2 result goes straight to o_ref."""
    x = x_ref[...].astype(w1_ref.dtype)          # in-kernel cast (cheap, hidden)
    h = jnp.dot(x, w1_ref[...], preferred_element_type=jnp.float32)
    h = _gelu_exact(h + b1_ref[...])
    # dropout: identity in eval mode.
    y = jnp.dot(h.astype(w2_ref.dtype), w2_ref[...],
                preferred_element_type=jnp.float32)
    o_ref[...] = (y + b2_ref[...]).astype(o_ref.dtype)


def _mlp_kernel_streamed(x_ref, w1_ref, b1_ref, w2_ref, b2_ref, o_ref, acc_ref):
    """(row-tile, mlp_dim-tile) grid; mlp_dim streamed, f32 scratch accumulator.

    b2 is folded into the accumulator init (no extra finalize add pass)."""
    j = pl.program_id(1)

    @pl.when(j == 0)
    def _init():
        acc_ref[...] = jnp.broadcast_to(b2_ref[...], acc_ref.shape)

    x = x_ref[...].astype(w1_ref.dtype)
    h = jnp.dot(x, w1_ref[...], preferred_element_type=jnp.float32)
    h = _gelu_exact(h + b1_ref[...])
    # dropout: identity in eval mode.
    acc_ref[...] += jnp.dot(h.astype(w2_ref.dtype), w2_ref[...],
                            preferred_element_type=jnp.float32)

    @pl.when(j == pl.num_programs(1) - 1)
    def _finalize():
        o_ref[...] = acc_ref[...].astype(o_ref.dtype)


# ---------------------------------------------------------------------------
# Wrapper / tiling policy
# ---------------------------------------------------------------------------

def _round_up(n, mult):
    return ((n + mult - 1) // mult) * mult


def _vmem_capacity_bytes():
    try:
        return int(pltpu.get_tpu_info().vmem_capacity_bytes)
    except Exception:
        return 64 * 1024 * 1024      # v7x per-TC size: safe lower bound


def _pick_m_tile(m, pref, align):
    """Row tile: big enough to amortize per-step cost / maximize weight reuse,
    but keep >= 2 row tiles when M is large so the 'parallel' M axis can shard
    across v7x's two TensorCores."""
    if m > pref:
        return pref                               # >= 2 tiles automatically
    if m >= 512:
        return _round_up(-(-m // 2), align)       # split 2-ways
    return _round_up(m, align)


def _pick_d_tile(d, pref, fits):
    """Largest multiple-of-128 divisor of d that is <= pref and fits VMEM."""
    cands = [c for c in range(128, min(d, max(pref, 128)) + 1, 128) if d % c == 0]
    if not cands:
        return d
    for c in sorted(cands, reverse=True):
        if fits(c):
            return c
    return cands[0]


def prepare_mlp_params(w1, b1, w2, b2, compute_dtype=jnp.bfloat16):
    """One-time parameter conversion (do this OUTSIDE the per-step call).

    w1: (H, D) = fc1.weight.T, b1: (D,), w2: (D, H) = fc2.weight.T, b2: (H,).
    Weights are cast once to `compute_dtype` (bf16 recommended: all TPU MXUs
    are bf16-native); biases stay f32 as (1, N) rows."""
    cdt = jnp.dtype(compute_dtype)
    return (jnp.asarray(w1, cdt),
            jnp.asarray(b1, jnp.float32).reshape(1, -1),
            jnp.asarray(w2, cdt),
            jnp.asarray(b2, jnp.float32).reshape(1, -1))


def mlp_pallas(x, w1, b1, w2, b2, *, tm=512, td=1024, _force_td=None):
    """TransUNet MLP forward: fc2(gelu(fc1(x))), eval-mode dropout.

    x : (B, S, H) activations (any float dtype; cast to the weight dtype
        in-kernel).
    w1/b1/w2/b2 : as returned by prepare_mlp_params (weights pre-cast once to
        the compute dtype; biases f32 (1, N) rows).
    Returns (B, S, H) in x.dtype.
    """
    B, S, H = x.shape
    Hw, D = w1.shape
    assert Hw == H and w2.shape == (D, H)
    assert b1.shape == (1, D) and b2.shape == (1, H)
    M = B * S

    cdt = jnp.dtype(w1.dtype)            # compute dtype = prepared weight dtype
    out_dt = jnp.dtype(x.dtype)
    x_isz = jnp.dtype(x.dtype).itemsize
    w_isz = cdt.itemsize
    o_isz = out_dt.itemsize

    align = 16 if cdt == jnp.dtype(jnp.bfloat16) else 8
    tm_eff = _pick_m_tile(M, tm, align)
    m_pad = _round_up(M, tm_eff)
    grid_m = m_pad // tm_eff

    cap = _vmem_capacity_bytes()
    budget = int(0.70 * cap)             # tile plan targets ~70% of physical

    # VMEM footprint with W1/W2 fully resident (constant block index => the
    # pipeline fetches them once; double-buffer allocation still counted).
    resident_need = (
        2 * tm_eff * H * x_isz           # x tile (double-buffered)
        + 2 * tm_eff * H * o_isz         # out tile (double-buffered)
        + 2 * 2 * H * D * w_isz          # w1 + w2 blocks
        + 2 * (D + H) * 4                # bias rows
        + tm_eff * D * 4                 # fc1/GELU intermediate (f32)
        + 2 * tm_eff * H * 4             # fc2 f32 result + cast headroom
    )

    def _streamed_need(td_):
        return (2 * tm_eff * H * x_isz
                + 2 * tm_eff * H * o_isz
                + 2 * H * td_ * w_isz + 2 * td_ * H * w_isz   # W1/W2 slabs
                + 2 * (td_ + H) * 4
                + tm_eff * H * 4          # f32 accumulator scratch
                + tm_eff * td_ * 4        # fc1/GELU intermediate (f32)
                + 2 * tm_eff * H * 4)

    if _force_td is not None:
        assert D % _force_td == 0
        resident, td_eff = False, _force_td
    else:
        resident = resident_need <= budget
        td_eff = D if resident else _pick_d_tile(
            D, td, lambda c: _streamed_need(c) <= budget)

    x2d = x.reshape(M, H)
    if m_pad != M:                        # skip the pad copy when tm divides M
        x2d = jnp.pad(x2d, ((0, m_pad - M), (0, 0)))

    need = resident_need if resident else _streamed_need(td_eff)
    # Generation-aware cap: ~54 MiB on v7x (64 MiB phys), ~108 MiB on v5e/v6e.
    vmem_limit = min(int(0.85 * cap), max(int(1.25 * need), 32 * 1024 * 1024))

    weight_bytes = 2 * H * D * w_isz
    cost = pl.CostEstimate(
        flops=4 * m_pad * H * D,                        # two matmuls
        transcendentals=m_pad * D,                      # erf per intermediate
        bytes_accessed=(m_pad * H * x_isz + m_pad * H * o_isz + (D + H) * 4
                        + (weight_bytes if resident else grid_m * weight_bytes)),
    )

    if resident:
        out2d = pl.pallas_call(
            _mlp_kernel_resident,
            out_shape=jax.ShapeDtypeStruct((m_pad, H), out_dt),
            grid_spec=pltpu.PrefetchScalarGridSpec(
                num_scalar_prefetch=0,
                grid=(grid_m,),
                in_specs=[
                    pl.BlockSpec((tm_eff, H), lambda i: (i, 0)),   # x row tile
                    pl.BlockSpec((H, D), lambda i: (0, 0)),        # W1 (resident)
                    pl.BlockSpec((1, D), lambda i: (0, 0)),        # b1
                    pl.BlockSpec((D, H), lambda i: (0, 0)),        # W2 (resident)
                    pl.BlockSpec((1, H), lambda i: (0, 0)),        # b2
                ],
                out_specs=pl.BlockSpec((tm_eff, H), lambda i: (i, 0)),
            ),
            compiler_params=pltpu.CompilerParams(
                dimension_semantics=("parallel",),
                vmem_limit_bytes=vmem_limit,
            ),
            cost_estimate=cost,
        )(x2d, w1, b1, w2, b2)
    else:
        out2d = pl.pallas_call(
            _mlp_kernel_streamed,
            out_shape=jax.ShapeDtypeStruct((m_pad, H), out_dt),
            grid_spec=pltpu.PrefetchScalarGridSpec(
                num_scalar_prefetch=0,
                grid=(grid_m, D // td_eff),
                in_specs=[
                    pl.BlockSpec((tm_eff, H), lambda i, j: (i, 0)),   # x row tile
                    pl.BlockSpec((H, td_eff), lambda i, j: (0, j)),   # W1 col slab
                    pl.BlockSpec((1, td_eff), lambda i, j: (0, j)),   # b1 slice
                    pl.BlockSpec((td_eff, H), lambda i, j: (j, 0)),   # W2 row slab
                    pl.BlockSpec((1, H), lambda i, j: (0, 0)),        # b2
                ],
                out_specs=pl.BlockSpec((tm_eff, H), lambda i, j: (i, 0)),
                scratch_shapes=[pltpu.VMEM((tm_eff, H), jnp.float32)],
            ),
            compiler_params=pltpu.CompilerParams(
                dimension_semantics=("parallel", "arbitrary"),
                vmem_limit_bytes=vmem_limit,
            ),
            cost_estimate=cost,
        )(x2d, w1, b1, w2, b2)

    return out2d[:M].reshape(B, S, H)


# ---------------------------------------------------------------------------
# Reference / test
# ---------------------------------------------------------------------------

def _xavier_uniform(key, fan_in, fan_out, dtype=jnp.float32):
    # matches torch.nn.init.xavier_uniform_ bound
    limit = math.sqrt(6.0 / (fan_in + fan_out))
    return jax.random.uniform(key, (fan_in, fan_out), dtype=dtype,
                              minval=-limit, maxval=limit)


def _reference_mlp(x, w1, b1, w2, b2):
    h = x @ w1 + b1
    h = 0.5 * h * (1.0 + lax.erf(h * _INV_SQRT2))
    return h @ w2 + b2


if __name__ == "__main__":
    # Small shapes consistent with the module: hidden_size=32, mlp_dim=128,
    # token sequence (B=2, S=8).
    B, S, H, D = 2, 8, 32, 128
    key = jax.random.PRNGKey(0)
    kx, k1, k2, k3, k4 = jax.random.split(key, 5)

    x = jax.random.normal(kx, (B, S, H), dtype=jnp.float32)
    w1 = _xavier_uniform(k1, H, D)                        # fc1 weight^T: (H, D)
    b1 = 1e-6 * jax.random.normal(k2, (D,), jnp.float32)  # fc1 bias
    w2 = _xavier_uniform(k3, D, H)                        # fc2 weight^T: (D, H)
    b2 = 1e-6 * jax.random.normal(k4, (H,), jnp.float32)  # fc2 bias

    y_ref = _reference_mlp(x, w1, b1, w2, b2)

    # 1) default bf16 MXU path; params converted once outside the call.
    p_bf16 = prepare_mlp_params(w1, b1, w2, b2, compute_dtype=jnp.bfloat16)
    y_bf16 = mlp_pallas(x, *p_bf16)
    jax.block_until_ready(y_bf16)
    assert y_bf16.shape == y_ref.shape
    assert jnp.allclose(y_bf16, y_ref, atol=3e-2, rtol=3e-2), "bf16 path mismatch"

    # 2) f32 path (tight check against the PyTorch-equivalent reference).
    p_f32 = prepare_mlp_params(w1, b1, w2, b2, compute_dtype=jnp.float32)
    y_f32 = mlp_pallas(x, *p_f32)
    jax.block_until_ready(y_f32)
    assert jnp.allclose(y_f32, y_ref, atol=1e-4, rtol=1e-4), "f32 path mismatch"

    # 3) streamed (mlp_dim-tiled, accumulator) kernel path, exercised explicitly.
    D2 = 256
    w1b = _xavier_uniform(k1, H, D2)
    b1b = 1e-6 * jax.random.normal(k2, (D2,), jnp.float32)
    w2b = _xavier_uniform(k3, D2, H)
    y2_ref = _reference_mlp(x, w1b, b1b, w2b, b2)
    p2 = prepare_mlp_params(w1b, b1b, w2b, b2, compute_dtype=jnp.float32)
    y2 = mlp_pallas(x, *p2, _force_td=128)
    jax.block_until_ready(y2)
    assert jnp.allclose(y2, y2_ref, atol=1e-4, rtol=1e-4), "streamed path mismatch"

    print("KERNEL_OK")
</pallas_src>

<mosaic_0001>
module attributes {stable_mosaic.version = 11 : i64} {
  func.func @_mlp_kernel_resident(%arg0: i32, %arg1: memref<16x32xf32, #tpu.memory_space<vmem>>, %arg2: memref<32x128xbf16, #tpu.memory_space<vmem>>, %arg3: memref<1x128xf32, #tpu.memory_space<vmem>>, %arg4: memref<128x32xbf16, #tpu.memory_space<vmem>>, %arg5: memref<1x32xf32, #tpu.memory_space<vmem>>, %arg6: memref<16x32xf32, #tpu.memory_space<vmem>>) attributes {dimension_semantics = [#tpu.dimension_semantics<parallel>], iteration_bounds = array<i64: 1>, scalar_prefetch = 0 : i64, scratch_operands = 0 : i64, tpu.core_type = #tpu.core_type<tc>, window_params = [{transform_indices = @transform_0, window_bounds = array<i64: 16, 32>}, {pipeline_mode = #tpu.pipeline_mode<synchronous>, transform_indices = @transform_1, window_bounds = array<i64: 32, 128>}, {pipeline_mode = #tpu.pipeline_mode<synchronous>, transform_indices = @transform_2, window_bounds = array<i64: 1, 128>}, {pipeline_mode = #tpu.pipeline_mode<synchronous>, transform_indices = @transform_3, window_bounds = array<i64: 128, 32>}, {pipeline_mode = #tpu.pipeline_mode<synchronous>, transform_indices = @transform_4, window_bounds = array<i64: 1, 32>}, {transform_indices = @transform_5, window_bounds = array<i64: 16, 32>}]} {
    %c0 = arith.constant 0 : index
    %c0_0 = arith.constant 0 : index
    %0 = vector.load %arg1[%c0, %c0_0] : memref<16x32xf32, #tpu.memory_space<vmem>>, vector<16x32xf32>
    %1 = arith.truncf %0 : vector<16x32xf32> to vector<16x32xbf16>
    %c0_1 = arith.constant 0 : index
    %c0_2 = arith.constant 0 : index
    %2 = vector.load %arg2[%c0_1, %c0_2] : memref<32x128xbf16, #tpu.memory_space<vmem>>, vector<32x128xbf16>
    %cst = arith.constant dense<0.000000e+00> : vector<16x128xf32>
    %3 = tpu.matmul %1, %2, %cst {dimension_numbers = #tpu.dot_dimension_numbers<[1], [0], [0], [1], [0, 0, 1, 1], [], []>} : vector<16x32xbf16>, vector<32x128xbf16>, vector<16x128xf32> -> vector<16x128xf32>
    %c0_3 = arith.constant 0 : index
    %c0_4 = arith.constant 0 : index
    %4 = vector.load %arg3[%c0_3, %c0_4] : memref<1x128xf32, #tpu.memory_space<vmem>>, vector<1x128xf32>
    %5 = vector.broadcast %4 : vector<1x128xf32> to vector<16x128xf32>
    %6 = arith.addf %3, %5 : vector<16x128xf32>
    %cst_5 = arith.constant 5.000000e-01 : f32
    %7 = vector.broadcast %cst_5 : f32 to vector<16x128xf32>
    %8 = arith.mulf %7, %6 : vector<16x128xf32>
    %cst_6 = arith.constant 0.707106769 : f32
    %9 = vector.broadcast %cst_6 : f32 to vector<16x128xf32>
    %10 = arith.mulf %6, %9 : vector<16x128xf32>
    %11 = math.erf %10 : vector<16x128xf32>
    %cst_7 = arith.constant 1.000000e+00 : f32
    %12 = vector.broadcast %cst_7 : f32 to vector<16x128xf32>
    %13 = arith.addf %12, %11 : vector<16x128xf32>
    %14 = arith.mulf %8, %13 : vector<16x128xf32>
    %15 = arith.truncf %14 : vector<16x128xf32> to vector<16x128xbf16>
    %c0_8 = arith.constant 0 : index
    %c0_9 = arith.constant 0 : index
    %16 = vector.load %arg4[%c0_8, %c0_9] : memref<128x32xbf16, #tpu.memory_space<vmem>>, vector<128x32xbf16>
    %cst_10 = arith.constant dense<0.000000e+00> : vector<16x32xf32>
    %17 = tpu.matmul %15, %16, %cst_10 {dimension_numbers = #tpu.dot_dimension_numbers<[1], [0], [0], [1], [0, 0, 1, 1], [], []>} : vector<16x128xbf16>, vector<128x32xbf16>, vector<16x32xf32> -> vector<16x32xf32>
    %c0_11 = arith.constant 0 : index
    %c0_12 = arith.constant 0 : index
    %18 = vector.load %arg5[%c0_11, %c0_12] : memref<1x32xf32, #tpu.memory_space<vmem>>, vector<1x32xf32>
    %19 = vector.broadcast %18 : vector<1x32xf32> to vector<16x32xf32>
    %20 = arith.addf %17, %19 : vector<16x32xf32>
    %c0_13 = arith.constant 0 : index
    %c0_14 = arith.constant 0 : index
    %21 = vector.load %arg6[%c0_13, %c0_14] : memref<16x32xf32, #tpu.memory_space<vmem>>, vector<16x32xf32>
    tpu.vector_store %arg6[%c0_13, %c0_14], %20 {strides = array<i32>} : memref<16x32xf32, #tpu.memory_space<vmem>>, vector<16x32xf32>,
    return
  }
  func.func @transform_0(%arg0: i32) -> (i32, i32) {
    %c0_i32 = arith.constant 0 : i32
    %c0_i32_0 = arith.constant 0 : i32
    return %arg0, %c0_i32 : i32, i32
  }
  func.func @transform_1(%arg0: i32) -> (i32, i32) {
    %c0_i32 = arith.constant 0 : i32
    %c0_i32_0 = arith.constant 0 : i32
    %c0_i32_1 = arith.constant 0 : i32
    return %c0_i32, %c0_i32_0 : i32, i32
  }
  func.func @transform_2(%arg0: i32) -> (i32, i32) {
    %c0_i32 = arith.constant 0 : i32
    %c0_i32_0 = arith.constant 0 : i32
    %c0_i32_1 = arith.constant 0 : i32
    return %c0_i32, %c0_i32_0 : i32, i32
  }
  func.func @transform_3(%arg0: i32) -> (i32, i32) {
    %c0_i32 = arith.constant 0 : i32
    %c0_i32_0 = arith.constant 0 : i32
    %c0_i32_1 = arith.constant 0 : i32
    return %c0_i32, %c0_i32_0 : i32, i32
  }
  func.func @transform_4(%arg0: i32) -> (i32, i32) {
    %c0_i32 = arith.constant 0 : i32
    %c0_i32_0 = arith.constant 0 : i32
    %c0_i32_1 = arith.constant 0 : i32
    return %c0_i32, %c0_i32_0 : i32, i32
  }
  func.func @transform_5(%arg0: i32) -> (i32, i32) {
    %c0_i32 = arith.constant 0 : i32
    %c0_i32_0 = arith.constant 0 : i32
    return %arg0, %c0_i32 : i32, i32
  }
}

</mosaic_0001>

<llo_original>
// kernel: tpu_custom_call.1
$region0: #{tpu_custom_call.1}
  #allocation0 [shape = 'u32[]', space=smem, size = 0x4, offset = 0x4, fixed_abs, tag = 'smem constant byte address 0x4 - core index']
  #allocation1 [shape = 'u32[144,128]{1,0:T(1,128)}', space=vmem, size = 0x12000, scoped, tag = 'internal scratch']
  %s0 = inlined_call_operand.vmem [shape: f32[16,32], index: 0, kind: input, shape index: {}]
  %s1 = inlined_call_operand.vmem [shape: bf16[32,128], index: 1, kind: input, shape index: {}]
  %s2 = inlined_call_operand.vmem [shape: f32[1,128], index: 2, kind: input, shape index: {}]
  %s3 = inlined_call_operand.vmem [shape: bf16[128,32], index: 3, kind: input, shape index: {}]
  %s4 = inlined_call_operand.vmem [shape: f32[1,32], index: 4, kind: input, shape index: {}]
  %s5 = inlined_call_operand.hbm [shape: f32[16,32], index: 5, kind: output, shape index: {}]
  %s6 = sld [smem:[#allocation0]]
  $region30: #{tpu_custom_call.1} parent=0
    _
  %s8 = ssub.s32 1, %s6
  %s9 = scalar_select 0, %s8, %s6
  $region1: #{tpu_custom_call.1} parent=0
    #allocation2 [shape = 'u8[8192]{0}', space=vmem, size = 0x2000, scoped, tag = 'output window, operand 0, single buffered']
    #allocation3 [shape = 's32[1]{0}', space=sflag, size = 0x4, scoped, tag = 'scoped memory for tpu_custom_call.1']
    %10 = vsyncpa [#allocation3], 0
    // Predicated region
    $region2: #{tpu_custom_call.1} parent=1 // pred_check
      _
    $region3: #{tpu_custom_call.1} parent=1 // pred_check_branch
      %12 = sbr.rel (0) target = $region5
    $region4: #{tpu_custom_call.1} parent=1 // pred_region
      _
    $region5: #{tpu_custom_call.1} parent=1 // pred_fallthru
      _
    // Predicated region
    $region6: #{tpu_custom_call.1} parent=1 // pred_check
      _
    $region7: #{tpu_custom_call.1} parent=1 // pred_check_branch
      %14 = sbr.rel (0) target = $region9
    $region8: #{tpu_custom_call.1} parent=1 // pred_region
      _
    $region9: #{tpu_custom_call.1} parent=1 // pred_fallthru
      _
    // Predicated region
    $region10: #{tpu_custom_call.1} parent=1 // pred_check
      _
    $region11: #{tpu_custom_call.1} parent=1 // pred_check_branch
      %16 = sbr.rel (0) target = $region13
    $region12: #{tpu_custom_call.1} parent=1 // pred_region
      _
    $region13: #{tpu_custom_call.1} parent=1 // pred_fallthru
      _
    // Predicated region
    $region14: #{tpu_custom_call.1} parent=1 // pred_check
      _
    $region15: #{tpu_custom_call.1} parent=1 // pred_check_branch
      %18 = sbr.rel (0) target = $region17
    $region16: #{tpu_custom_call.1} parent=1 // pred_region
      _
    $region17: #{tpu_custom_call.1} parent=1 // pred_fallthru
      _
    // Predicated region
    $region18: #{tpu_custom_call.1} parent=1 // pred_check
      _
    $region19: #{tpu_custom_call.1} parent=1 // pred_check_branch
      %20 = sbr.rel (0) target = $region21
    $region20: #{tpu_custom_call.1} parent=1 // pred_region
      _
    $region21: #{tpu_custom_call.1} parent=1 // pred_fallthru
      _
    %v22 = vld [vmem:[%s0] sm:$0xff]
    %v23 = vld [vmem:[%s0 + $0x8] sm:$0xff]
    %v24 = vpack.c.bf16 %v23, %v22
    %v25 = vld [vmem:[%s1] sm:$0xf]
    %v26 = vld [vmem:[%s1 + $0x4] sm:$0xf]
    %v27 = vld [vmem:[%s1 + $0x8] sm:$0xf]
    %v28 = vld [vmem:[%s1 + $0xc] sm:$0xf]
    %v29 = vld [vmem:[%s2] sm:$0x1]
    %v31 = vlaneseq
    %v32 = vshrl.u32 %v31, 7
    %v33 = vsub.s32 0, %v32
    %v34 = vrot.slane %v29, %v33
    %v40 = vunpack.c.l.b16 %v25
    %v41 = vunpack.c.l.b16 %v26
    %v42 = vunpack.c.l.b16 %v27
    %v43 = vunpack.c.l.b16 %v28
    %v44 = vpack.c.b16 %v41, %v40
    %v45 = vpack.c.b16 %v43, %v42
    %vm48 = vcmask 261120
    %v50 = vsel %vm48, %v24, 0
    %52 = vmatprep.subr.bf16.mxu0 0
    %53 = vmatpush1.bf16.msra.mxu0 %v44
    %54 = vmatprep.subr.bf16.mxu0 0
    %55 = vmatpush1.bf16.msra.mxu0 %v45
    %56 = vmatprep.subr.bf16.mxu0 0
    %57 = vmatpush1.bf16.msra.mxu0 0
    %58 = vmatprep.subr.bf16.mxu0 0
    %59 = vmatpush1.bf16.msra.mxu0 0
    %60 = vmatprep.subr.bf16.mxu0 0
    %61 = vmatpush1.bf16.msra.mxu0 0
    %62 = vmatprep.subr.bf16.mxu0 0
    %63 = vmatpush1.bf16.msra.mxu0 0
    %64 = vmatprep.subr.bf16.mxu0 0
    %65 = vmatpush1.bf16.msra.mxu0 0
    %66 = vmatprep.subr.bf16.mxu0 0
    %67 = vmatpush1.bf16.msra.mxu0 0
    %68 = vmatprep.subr.bf16.mxu0 0
    %69 = vmatpush1.bf16.msra.mxu0 0
    %70 = vmatprep.subr.bf16.mxu0 0
    %71 = vmatpush1.bf16.msra.mxu0 0
    %72 = vmatprep.subr.bf16.mxu0 0
    %73 = vmatpush1.bf16.msra.mxu0 0
    %74 = vmatprep.subr.bf16.mxu0 0
    %75 = vmatpush1.bf16.msra.mxu0 0
    %76 = vmatprep.subr.bf16.mxu0 0
    %77 = vmatpush1.bf16.msra.mxu0 0
    %78 = vmatprep.subr.bf16.mxu0 0
    %79 = vmatpush1.bf16.msra.mxu0 0
    %80 = vmatprep.subr.bf16.mxu0 0
    %81 = vmatpush1.bf16.msra.mxu0 0
    %82 = vmatprep.subr.bf16.mxu0 0
    %83 = vmatpush1.bf16.msra.mxu0 0
    %84 = vmatprep.mubr.bf16.mxu0 0
    %85 = vmatmul.mubr.bf16.gmra.mrb[0].mxu0 %v50
    %v86 = vpop.f32.mrb[0].mxu0
    %v87 = vadd.f32 %v34, %v86
    %v88 = vpop.f32.mrb[0].mxu0
    %v89 = vpop.f32.mrb[0].mxu0
    %v90 = vadd.f32 %v34, %v89
    %v91 = vpop.f32.mrb[0].mxu0
    %92 = vdwg.mxu0
    %v93 = vmul.f32 %v87, 0.5
    %v94 = vmul.f32 %v90, 0.5
    %v95 = vmul.f32 %v87, 0.70710677
    %v96 = vmul.f32 %v90, 0.70710677
    %v97 = verf.f32.pop %v95
    %v98 = verf.f32.pop %v96
    %v99 = vadd.f32 %v97, 1.0
    %v100 = vadd.f32 %v98, 1.0
    %v101 = vmul.f32 %v93, %v99
    %v102 = vmul.f32 %v94, %v100
    %v103 = vpack.c.bf16 %v102, %v101
    %v104 = vld [vmem:[%s3] sm:$0xf]
    %v105 = vld [vmem:[%s3 + $0x4] sm:$0xf]
    %v106 = vld [vmem:[%s3 + $0x8] sm:$0xf]
    %v107 = vld [vmem:[%s3 + $0xc] sm:$0xf]
    %v108 = vld [vmem:[%s3 + $0x10] sm:$0xf]
    %v109 = vld [vmem:[%s3 + $0x14] sm:$0xf]
    %v110 = vld [vmem:[%s3 + $0x18] sm:$0xf]
    %v111 = vld [vmem:[%s3 + $0x1c] sm:$0xf]
    %v112 = vld [vmem:[%s3 + $0x20] sm:$0xf]
    %v113 = vld [vmem:[%s3 + $0x24] sm:$0xf]
    %v114 = vld [vmem:[%s3 + $0x28] sm:$0xf]
    %v115 = vld [vmem:[%s3 + $0x2c] sm:$0xf]
    %v116 = vld [vmem:[%s3 + $0x30] sm:$0xf]
    %v117 = vld [vmem:[%s3 + $0x34] sm:$0xf]
    %v118 = vld [vmem:[%s3 + $0x38] sm:$0xf]
    %v119 = vld [vmem:[%s3 + $0x3c] sm:$0xf]
    %v120 = vld [vmem:[%s4] sm:$0x1]
    %v122 = vlaneseq
    %v123 = vshrl.u32 %v122, 7
    %v124 = vsub.s32 0, %v123
    %v125 = vrot.slane %v120, %v124
    %v143 = vunpack.c.l.b16 %v104
    %v144 = vunpack.c.l.b16 %v105
    %v145 = vunpack.c.l.b16 %v106
    %v146 = vunpack.c.l.b16 %v107
    %v147 = vunpack.c.l.b16 %v108
    %v148 = vunpack.c.l.b16 %v109
    %v149 = vunpack.c.l.b16 %v110
    %v150 = vunpack.c.l.b16 %v111
    %v151 = vunpack.c.l.b16 %v112
    %v152 = vunpack.c.l.b16 %v113
    %v153 = vunpack.c.l.b16 %v114
    %v154 = vunpack.c.l.b16 %v115
    %v155 = vunpack.c.l.b16 %v116
    %v156 = vunpack.c.l.b16 %v117
    %v157 = vunpack.c.l.b16 %v118
    %v158 = vunpack.c.l.b16 %v119
    %v159 = vpack.c.b16 %v144, %v143
    %v160 = vpack.c.b16 %v146, %v145
    %v161 = vpack.c.b16 %v148, %v147
    %v162 = vpack.c.b16 %v150, %v149
    %v163 = vpack.c.b16 %v152, %v151
    %v164 = vpack.c.b16 %v154, %v153
    %v165 = vpack.c.b16 %v156, %v155
    %v166 = vpack.c.b16 %v158, %v157
    %175 = vmatprep.subr.bf16.mxu0 0
    %176 = vmatpush1.bf16.msra.mxu0 %v159
    %177 = vmatprep.subr.bf16.mxu0 0
    %178 = vmatpush1.bf16.msra.mxu0 %v160
    %179 = vmatprep.subr.bf16.mxu0 0
    %180 = vmatpush1.bf16.msra.mxu0 %v161
    %181 = vmatprep.subr.bf16.mxu0 0
    %182 = vmatpush1.bf16.msra.mxu0 %v162
    %183 = vmatprep.subr.bf16.mxu0 0
    %184 = vmatpush1.bf16.msra.mxu0 %v163
    %185 = vmatprep.subr.bf16.mxu0 0
    %186 = vmatpush1.bf16.msra.mxu0 %v164
    %187 = vmatprep.subr.bf16.mxu0 0
    %188 = vmatpush1.bf16.msra.mxu0 %v165
    %189 = vmatprep.subr.bf16.mxu0 0
    %190 = vmatpush1.bf16.msra.mxu0 %v166
    %191 = vmatprep.subr.bf16.mxu0 0
    %192 = vmatpush1.bf16.msra.mxu0 0
    %193 = vmatprep.subr.bf16.mxu0 0
    %194 = vmatpush1.bf16.msra.mxu0 0
    %195 = vmatprep.subr.bf16.mxu0 0
    %196 = vmatpush1.bf16.msra.mxu0 0
    %197 = vmatprep.subr.bf16.mxu0 0
    %198 = vmatpush1.bf16.msra.mxu0 0
    %199 = vmatprep.subr.bf16.mxu0 0
    %200 = vmatpush1.bf16.msra.mxu0 0
    %201 = vmatprep.subr.bf16.mxu0 0
    %202 = vmatpush1.bf16.msra.mxu0 0
    %203 = vmatprep.subr.bf16.mxu0 0
    %204 = vmatpush1.bf16.msra.mxu0 0
    %205 = vmatprep.subr.bf16.mxu0 0
    %206 = vmatpush1.bf16.msra.mxu0 0
    %207 = vmatprep.mubr.bf16.mxu0 0
    %208 = vmatmul.mubr.bf16.gmra.mrb[0].mxu0 %v103
    %v209 = vpop.f32.mrb[0].mxu0
    %v210 = vadd.f32 %v125, %v209
    %v211 = vpop.f32.mrb[0].mxu0
    %v212 = vpop.f32.mrb[0].mxu0
    %v213 = vadd.f32 %v125, %v212
    %v214 = vpop.f32.mrb[0].mxu0
    %215 = vdwg.mxu0
    %216 = vst.msk [vmem:[#allocation2] sm:$0xff] %vm48, %v210
    %217 = vst.msk [vmem:[#allocation2 + $0x8] sm:$0xff] %vm48, %v213
    // Predicated region
    $region22: #{tpu_custom_call.1} parent=1 // pred_check
      _
    $region23: #{tpu_custom_call.1} parent=1 // pred_check_branch
      %219 = sbr.rel (0) target = $region25
    $region24: #{tpu_custom_call.1} parent=1 // pred_region
      %s221 = ssub.s32 256, 256
      %222 = vsyncadd [#allocation3], %s221
      %s223 = sshll.u32 [#allocation2], 4
      %s224 = int_to_ptr.vmem [resolvable:$true] %s223
      %229 = dma.vmem_to_hbm [thread:$0]  %s224, 256, %s5, [#allocation3], 128, 128, 8
    $region25: #{tpu_custom_call.1} parent=1 // pred_fallthru
      _
    // Predicated region
    $region26: #{tpu_custom_call.1} parent=1 // pred_check
      _
    $region27: #{tpu_custom_call.1} parent=1 // pred_check_branch
      %231 = sbr.rel (0) target = $region29
    $region28: #{tpu_custom_call.1} parent=1 // pred_region
      %232 = dma.done [#allocation3], 256
    $region29: #{tpu_custom_call.1} parent=1 // pred_fallthru
      _
    %233 = vsyncpa [#allocation3], 1

</llo_original>
